<compile_context>
chip_gen: v7x
topology: tpu7x:2x2x1
jax: 0.10.0
libtpu: 0.0.40
codegen_flags: <defaults>
</compile_context>

<pallas_src>
import functools

import jax
import jax.numpy as jnp
from jax.experimental import pallas as pl
from jax.experimental.pallas import tpu as pltpu

COEF = 0.97  # module default; flipped_filter = [-coef, 1.0]


def _preemphasis_kernel(x_ref, o_ref, carry_ref, *, coef):
    # x_ref: (b_tile, t_tile) native dtype; o_ref: (b_tile, t_tile) float32
    # carry_ref: (b_tile, 1) f32 scratch holding previous T-tile's last sample
    t_idx = pl.program_id(1)

    x = x_ref[...].astype(jnp.float32)        # input.float() done in-kernel
    prev = pltpu.roll(x, shift=1, axis=1)     # prev[:, t] = x[:, t-1] (XLU)

    # Bulk result; column 0 is fixed up below (boundary / reflect pad).
    o_ref[...] = x - coef * prev

    @pl.when(t_idx == 0)
    def _():
        # Reflect padding: y[:, 0] = x[:, 0] - coef * x[:, 1]
        o_ref[:, 0:1] = x[:, 0:1] - coef * x[:, 1:2]

    @pl.when(t_idx != 0)
    def _():
        # Stitch across T tiles using the carried last sample.
        o_ref[:, 0:1] = x[:, 0:1] - coef * carry_ref[...]

    # Carry this tile's last sample to the next T tile of the same B tile.
    carry_ref[...] = x[:, -1:]


def _tile(dim, target, align):
    if dim <= target:
        return dim                              # full dim: always a legal block
    return max(align, (target // align) * align)


def preemphasis(x, coef=COEF, *, b_tile_target=8, t_tile_target=4096):
    """x: (B, 1, T) float-ish array -> (B, T) float32 (PreEmphasis.forward)."""
    assert x.ndim == 3 and x.shape[1] == 1, "expected (B, 1, T) conv1d input"
    b, _, t = x.shape
    assert t >= 2, "reflect padding requires T >= 2"

    b_tile = _tile(b, b_tile_target, 8)         # sublane axis of output block
    t_tile = _tile(t, t_tile_target, 128)       # lane axis, multiple of 128 (or full T)
    grid = (pl.cdiv(b, b_tile), pl.cdiv(t, t_tile))

    kernel = functools.partial(_preemphasis_kernel, coef=float(coef))

    return pl.pallas_call(
        kernel,
        out_shape=jax.ShapeDtypeStruct((b, t), jnp.float32),
        grid_spec=pltpu.PrefetchScalarGridSpec(
            num_scalar_prefetch=0,
            grid=grid,
            in_specs=[
                # channel dim (size 1) squeezed via None -> kernel sees (b_tile, t_tile)
                pl.BlockSpec((b_tile, None, t_tile), lambda bi, ti: (bi, 0, ti)),
            ],
            out_specs=pl.BlockSpec((b_tile, t_tile), lambda bi, ti: (bi, ti)),
            scratch_shapes=[pltpu.VMEM((b_tile, 1), jnp.float32)],
        ),
        compiler_params=pltpu.CompilerParams(
            # B tiles independent (megacore on v7x); T axis carries the scratch.
            dimension_semantics=("parallel", "arbitrary"),
            vmem_limit_bytes=32 << 20,
        ),
    )(x)


def _reference(x, coef=COEF):
    xr = x.astype(jnp.float32)[:, 0, :]
    prev = jnp.concatenate([xr[:, 1:2], xr[:, :-1]], axis=1)
    return xr - coef * prev


if __name__ == "__main__":
    key = jax.random.PRNGKey(0)

    # Small shape consistent with the module's (B, 1, T) input.
    B, C, T = 2, 1, 16
    x = jax.random.normal(key, (B, C, T), dtype=jnp.float32)
    y = jax.block_until_ready(preemphasis(x))
    assert y.shape == (B, T)
    assert y.dtype == jnp.float32
    assert jnp.allclose(y, _reference(x), atol=1e-6), "mismatch vs reference"

    # Also exercise the multi-T-tile carry path and in-kernel bf16 -> f32 cast.
    k2 = jax.random.PRNGKey(0)
    x2 = jax.random.normal(k2, (2, 1, 512), dtype=jnp.bfloat16)
    y2 = jax.block_until_ready(preemphasis(x2, t_tile_target=128))
    assert jnp.allclose(y2, _reference(x2), atol=1e-6), "tiled mismatch vs reference"

    print("KERNEL_OK")
</pallas_src>

<mosaic_0001>
module attributes {stable_mosaic.version = 11 : i64} {
  func.func @_preemphasis_kernel(%arg0: i32, %arg1: i32, %arg2: memref<2x1x16xf32, #tpu.memory_space<vmem>>, %arg3: memref<2x16xf32, #tpu.memory_space<vmem>>, %arg4: memref<2x1xf32, #tpu.memory_space<vmem>>) attributes {dimension_semantics = [#tpu.dimension_semantics<parallel>, #tpu.dimension_semantics<arbitrary>], iteration_bounds = array<i64: 1, 1>, scalar_prefetch = 0 : i64, scratch_operands = 1 : i64, tpu.core_type = #tpu.core_type<tc>, window_params = [{transform_indices = @transform_0, window_bounds = array<i64: 2, 1, 16>}, {transform_indices = @transform_1, window_bounds = array<i64: 2, 16>}]} {
    %c0 = arith.constant 0 : index
    %c0_0 = arith.constant 0 : index
    %c0_1 = arith.constant 0 : index
    %0 = vector.load %arg2[%c0, %c0_0, %c0_1] : memref<2x1x16xf32, #tpu.memory_space<vmem>>, vector<2x1x16xf32>
    %1 = vector.shape_cast %0 : vector<2x1x16xf32> to vector<2x16xf32>
    %c1_i32 = arith.constant 1 : i32
    %2 = tpu.dynamic_rotate %1 by %c1_i32 dim 1 : vector<2x16xf32>, i32 -> vector<2x16xf32>
    %cst = arith.constant 9.700000e-01 : f32
    %3 = vector.broadcast %cst : f32 to vector<2x16xf32>
    %4 = arith.mulf %3, %2 : vector<2x16xf32>
    %5 = arith.subf %1, %4 : vector<2x16xf32>
    %c0_2 = arith.constant 0 : index
    %c0_3 = arith.constant 0 : index
    %6 = vector.load %arg3[%c0_2, %c0_3] : memref<2x16xf32, #tpu.memory_space<vmem>>, vector<2x16xf32>
    tpu.vector_store %arg3[%c0_2, %c0_3], %5 {strides = array<i32>} : memref<2x16xf32, #tpu.memory_space<vmem>>, vector<2x16xf32>,
    %c0_i32 = arith.constant 0 : i32
    %7 = arith.cmpi eq, %arg1, %c0_i32 : i32
    %8 = arith.extui %7 : i1 to i32
    %c0_i32_4 = arith.constant 0 : i32
    %9 = arith.cmpi ne, %8, %c0_i32_4 : i32
    scf.if %9 {
      %15 = vector.extract_strided_slice %1 {offsets = [0, 0], sizes = [2, 1], strides = [1, 1]} : vector<2x16xf32> to vector<2x1xf32>
      %16 = vector.extract_strided_slice %1 {offsets = [0, 1], sizes = [2, 1], strides = [1, 1]} : vector<2x16xf32> to vector<2x1xf32>
      %cst_9 = arith.constant 9.700000e-01 : f32
      %17 = vector.broadcast %cst_9 : f32 to vector<2x1xf32>
      %18 = arith.mulf %17, %16 : vector<2x1xf32>
      %19 = arith.subf %15, %18 : vector<2x1xf32>
      %c0_10 = arith.constant 0 : index
      %c0_11 = arith.constant 0 : index
      %20 = vector.load %arg3[%c0_10, %c0_11] : memref<2x16xf32, #tpu.memory_space<vmem>>, vector<2x1xf32>
      tpu.vector_store %arg3[%c0_10, %c0_11], %19 {strides = array<i32>} : memref<2x16xf32, #tpu.memory_space<vmem>>, vector<2x1xf32>,
    } else {
    }
    %c0_i32_5 = arith.constant 0 : i32
    %10 = arith.cmpi ne, %arg1, %c0_i32_5 : i32
    %11 = arith.extui %10 : i1 to i32
    %c0_i32_6 = arith.constant 0 : i32
    %12 = arith.cmpi ne, %11, %c0_i32_6 : i32
    scf.if %12 {
      %15 = vector.extract_strided_slice %1 {offsets = [0, 0], sizes = [2, 1], strides = [1, 1]} : vector<2x16xf32> to vector<2x1xf32>
      %c0_9 = arith.constant 0 : index
      %c0_10 = arith.constant 0 : index
      %16 = vector.load %arg4[%c0_9, %c0_10] : memref<2x1xf32, #tpu.memory_space<vmem>>, vector<2x1xf32>
      %cst_11 = arith.constant 9.700000e-01 : f32
      %17 = vector.broadcast %cst_11 : f32 to vector<2x1xf32>
      %18 = arith.mulf %17, %16 : vector<2x1xf32>
      %19 = arith.subf %15, %18 : vector<2x1xf32>
      %c0_12 = arith.constant 0 : index
      %c0_13 = arith.constant 0 : index
      %20 = vector.load %arg3[%c0_12, %c0_13] : memref<2x16xf32, #tpu.memory_space<vmem>>, vector<2x1xf32>
      tpu.vector_store %arg3[%c0_12, %c0_13], %19 {strides = array<i32>} : memref<2x16xf32, #tpu.memory_space<vmem>>, vector<2x1xf32>,
    } else {
    }
    %13 = vector.extract_strided_slice %1 {offsets = [0, 15], sizes = [2, 1], strides = [1, 1]} : vector<2x16xf32> to vector<2x1xf32>
    %c0_7 = arith.constant 0 : index
    %c0_8 = arith.constant 0 : index
    %14 = vector.load %arg4[%c0_7, %c0_8] : memref<2x1xf32, #tpu.memory_space<vmem>>, vector<2x1xf32>
    tpu.vector_store %arg4[%c0_7, %c0_8], %13 {strides = array<i32>} : memref<2x1xf32, #tpu.memory_space<vmem>>, vector<2x1xf32>,
    return
  }
  func.func @transform_0(%arg0: i32, %arg1: i32) -> (i32, i32, i32) {
    %c0_i32 = arith.constant 0 : i32
    %c0_i32_0 = arith.constant 0 : i32
    return %arg0, %c0_i32, %arg1 : i32, i32, i32
  }
  func.func @transform_1(%arg0: i32, %arg1: i32) -> (i32, i32) {
    %c0_i32 = arith.constant 0 : i32
    return %arg0, %arg1 : i32, i32
  }
}

</mosaic_0001>

<llo_original>
// kernel: tpu_custom_call.1
$region0: #{tpu_custom_call.1}
  #allocation0 [shape = 'u32[]', space=smem, size = 0x4, offset = 0x4, fixed_abs, tag = 'smem constant byte address 0x4 - core index']
  #allocation1 [shape = 'u32[144,128]{1,0:T(1,128)}', space=vmem, size = 0x12000, scoped, tag = 'internal scratch']
  #allocation2 [shape = 'f32[2,1]{1,0:T(2,128)}', space=vmem, size = 0x400, scoped, tag = 'scratch operand']
  %s0 = inlined_call_operand.hbm [shape: f32[2,1,16], index: 0, kind: input, shape index: {}]
  %s1 = inlined_call_operand.hbm [shape: f32[2,16], index: 1, kind: output, shape index: {}]
  %s2 = sld [smem:[#allocation0]]
  $region26: #{tpu_custom_call.1} parent=0
    _
  %s4 = ssub.s32 1, %s2
  %s5 = scalar_select 0, %s4, %s2
  $region1: #{tpu_custom_call.1} parent=0
    #allocation3 [shape = 'u8[1024]{0}', space=vmem, size = 0x400, scoped, tag = 'input window, operand 0, single buffered']
    #allocation4 [shape = 's32[1]{0}', space=sflag, size = 0x4, scoped, tag = 'scoped memory for tpu_custom_call.1']
    #allocation5 [shape = 's32[1]{0}', space=sflag, size = 0x4, scoped, tag = 'scoped memory for tpu_custom_call.1']
    #allocation6 [shape = 'u8[1024]{0}', space=vmem, size = 0x400, scoped, tag = 'output window, operand 0, single buffered']
    %6 = vsyncpa [#allocation4], 0
    %7 = vsyncpa [#allocation5], 0
    // Predicated region
    $region2: #{tpu_custom_call.1} parent=1 // pred_check
      _
    $region3: #{tpu_custom_call.1} parent=1 // pred_check_branch
      %9 = sbr.rel (0) target = $region5
    $region4: #{tpu_custom_call.1} parent=1 // pred_region
      %s11 = ssub.s32 32, 32
      %12 = vsyncadd [#allocation4], %s11
      %s13 = sshll.u32 [#allocation3], 4
      %s14 = int_to_ptr.vmem [resolvable:$true] %s13
      %19 = dma.hbm_to_vmem [thread:$0]  %s0, 32, %s14, [#allocation4], 16, 16, 1
    $region5: #{tpu_custom_call.1} parent=1 // pred_fallthru
      _
    // Predicated region
    $region6: #{tpu_custom_call.1} parent=1 // pred_check
      _
    $region7: #{tpu_custom_call.1} parent=1 // pred_check_branch
      %21 = sbr.rel (0) target = $region9
    $region8: #{tpu_custom_call.1} parent=1 // pred_region
      %22 = dma.done [#allocation4], 32
    $region9: #{tpu_custom_call.1} parent=1 // pred_fallthru
      _
    %v23 = vld [vmem:[#allocation3] sm:$0x1]
    %v24 = vld [vmem:[#allocation3 + $0x1] sm:$0x1]
    %v27 = vcombine.low %v23, %v24
    %v29 = vunpack.c.l.s4 1966171168
    %v30 = vunpack.c.0.s8 %v29
    %v31 = vlaneseq
    %v32 = vshrl.u32 %v31, 7
    %v33 = vsub.s32 %v30, %v32
    %v34 = vrot.slane %v27, %v33
    %v36 = vunpack.c.l.s4 1966171168
    %v37 = vunpack.c.0.s8 %v36
    %v38 = vlaneseq
    %v39 = vshrl.u32 %v38, 7
    %v40 = vsub.s32 %v37, %v39
    %v41 = vrot.slane %v34, %v40
    %vm43 = vcmask 1047680
    %44 = vrot.lane.b32.xlu0 %v41, 16
    %v45 = vpop.permute.xlu0 %44
    %v46 = vsel %vm43, %v45, %v41
    %47 = vrot.lane.b32.xlu0 %v46, 16
    %v48 = vpop.permute.xlu0 %47
    %v49 = vsel %vm43, %v48, %v41
    %v50 = vmul.f32 %v49, 0.97
    %v53 = vunpack.c.l.s4 1966171168
    %v54 = vunpack.c.0.s8 %v53
    %v55 = vlaneseq
    %v56 = vshrl.u32 %v55, 7
    %v57 = vsub.s32 %v54, %v56
    %v58 = vrot.slane %v50, %v57
    %v59 = vcombine.high %v58, %v58
    %v61 = vunpack.c.l.s4 1966171168
    %v62 = vunpack.c.0.s8 %v61
    %v63 = vlaneseq
    %v64 = vshrl.u32 %v63, 7
    %v65 = vsub.s32 %v62, %v64
    %v66 = vrot.slane %v58, %v65
    %v68 = vunpack.c.l.s4 1966171168
    %v69 = vunpack.c.0.s8 %v68
    %v70 = vlaneseq
    %v71 = vshrl.u32 %v70, 7
    %v72 = vsub.s32 %v69, %v71
    %v73 = vrot.slane %v59, %v72
    %74 = vrot.lane.b32.xlu0 %v66, 113
    %v75 = vpop.permute.xlu0 %74
    %76 = vrot.lane.b32.xlu0 %v73, 113
    %v77 = vpop.permute.xlu0 %76
    %v80 = vsub.f32 %v23, %v75
    %v81 = vsub.f32 %v24, %v77
    %v84 = vcombine.low %v80, %v81
    %v86 = vunpack.c.l.s4 1966171168
    %v87 = vunpack.c.0.s8 %v86
    %v88 = vlaneseq
    %v89 = vshrl.u32 %v88, 7
    %v90 = vsub.s32 %v87, %v89
    %v91 = vrot.slane %v84, %v90
    %v93 = vunpack.c.l.s4 1966171168
    %v94 = vunpack.c.0.s8 %v93
    %v95 = vlaneseq
    %v96 = vshrl.u32 %v95, 7
    %v97 = vsub.s32 %v94, %v96
    %v98 = vrot.slane %v91, %v97
    %vm100 = vcmask 123904
    %101 = vst.msk [vmem:[#allocation6] sm:$0x3] %vm100, %v98
    %p102 = scmp.eq.s32.totalorder 0, 0
    // Predicated region
    $region10: #{tpu_custom_call.1} parent=1 // pred_check
      %p103 = pneg %p102
    $region11: #{tpu_custom_call.1} parent=1 // pred_check_branch
      %105 = sbr.rel (%p103) target = $region13
    $region12: #{tpu_custom_call.1} parent=1 // pred_region
      %v106 = vmul.f32 %v23, 0.97
      %v107 = vmul.f32 %v24, 0.97
      %110 = vrot.lane.b32.xlu0 %v106, 127
      %v111 = vpop.permute.xlu0 %110
      %112 = vrot.lane.b32.xlu0 %v107, 127
      %v113 = vpop.permute.xlu0 %112
      %v116 = vsub.f32 %v23, %v111
      %v117 = vsub.f32 %v24, %v113
      %v120 = vcombine.low %v116, %v117
      %v122 = vunpack.c.l.s4 1966171168
      %v123 = vunpack.c.0.s8 %v122
      %v124 = vlaneseq
      %v125 = vshrl.u32 %v124, 7
      %v126 = vsub.s32 %v123, %v125
      %v127 = vrot.slane %v120, %v126
      %v129 = vunpack.c.l.s4 1966171168
      %v130 = vunpack.c.0.s8 %v129
      %v131 = vlaneseq
      %v132 = vshrl.u32 %v131, 7
      %v133 = vsub.s32 %v130, %v132
      %v134 = vrot.slane %v127, %v133
      %vm136 = vcmask 1024
      %137 = vst.msk [vmem:[#allocation6] sm:$0x3] %vm136, %v134
    $region13: #{tpu_custom_call.1} parent=1 // pred_fallthru
      _
    %p138 = scmp.ne.s32.totalorder 0, 0
    // Predicated region
    $region14: #{tpu_custom_call.1} parent=1 // pred_check
      %p139 = pneg %p138
    $region15: #{tpu_custom_call.1} parent=1 // pred_check_branch
      %141 = sbr.rel (%p139) target = $region17
    $region16: #{tpu_custom_call.1} parent=1 // pred_region
      %v142 = vld [vmem:[#allocation2] sm:$0x3]
      %v143 = vmul.f32 %v142, 0.97
      %v146 = vunpack.c.l.s4 1966171168
      %v147 = vunpack.c.0.s8 %v146
      %v148 = vlaneseq
      %v149 = vshrl.u32 %v148, 7
      %v150 = vsub.s32 %v147, %v149
      %v151 = vrot.slane %v143, %v150
      %v152 = vcombine.high %v151, %v151
      %v154 = vunpack.c.l.s4 1966171168
      %v155 = vunpack.c.0.s8 %v154
      %v156 = vlaneseq
      %v157 = vshrl.u32 %v156, 7
      %v158 = vsub.s32 %v155, %v157
      %v159 = vrot.slane %v151, %v158
      %v161 = vunpack.c.l.s4 1966171168
      %v162 = vunpack.c.0.s8 %v161
      %v163 = vlaneseq
      %v164 = vshrl.u32 %v163, 7
      %v165 = vsub.s32 %v162, %v164
      %v166 = vrot.slane %v152, %v165
      %v169 = vsub.f32 %v23, %v159
      %v170 = vsub.f32 %v24, %v166
      %v173 = vcombine.low %v169, %v170
      %v175 = vunpack.c.l.s4 1966171168
      %v176 = vunpack.c.0.s8 %v175
      %v177 = vlaneseq
      %v178 = vshrl.u32 %v177, 7
      %v179 = vsub.s32 %v176, %v178
      %v180 = vrot.slane %v173, %v179
      %v182 = vunpack.c.l.s4 1966171168
      %v183 = vunpack.c.0.s8 %v182
      %v184 = vlaneseq
      %v185 = vshrl.u32 %v184, 7
      %v186 = vsub.s32 %v183, %v185
      %v187 = vrot.slane %v180, %v186
      %vm189 = vcmask 1024
      %190 = vst.msk [vmem:[#allocation6] sm:$0x3] %vm189, %v187
    $region17: #{tpu_custom_call.1} parent=1 // pred_fallthru
      _
    %191 = vrot.lane.b32.xlu0 %v41, 113
    %v192 = vpop.permute.xlu0 %191
    %vm194 = vcmask 1024
    %195 = vst.msk [vmem:[#allocation2] sm:$0x3] %vm194, %v192
    // Predicated region
    $region18: #{tpu_custom_call.1} parent=1 // pred_check
      _
    $region19: #{tpu_custom_call.1} parent=1 // pred_check_branch
      %197 = sbr.rel (0) target = $region21
    $region20: #{tpu_custom_call.1} parent=1 // pred_region
      %s199 = ssub.s32 32, 32
      %200 = vsyncadd [#allocation5], %s199
      %s202 = sshll.u32 [#allocation6], 4
      %s203 = int_to_ptr.vmem [resolvable:$true] %s202
      %205 = dma.vmem_to_hbm [thread:$0]  %s203, 32, %s1, [#allocation5]
    $region21: #{tpu_custom_call.1} parent=1 // pred_fallthru
      _
    // Predicated region
    $region22: #{tpu_custom_call.1} parent=1 // pred_check
      _
    $region23: #{tpu_custom_call.1} parent=1 // pred_check_branch
      %207 = sbr.rel (0) target = $region25
    $region24: #{tpu_custom_call.1} parent=1 // pred_region
      %208 = dma.done [#allocation5], 32
    $region25: #{tpu_custom_call.1} parent=1 // pred_fallthru
      _
    %209 = vsyncpa [#allocation4], 1
    %210 = vsyncpa [#allocation5], 1

</llo_original>
